<compile_context>
chip_gen: v6e
topology: v6e:2x2x1
jax: 0.10.0
libtpu: 0.0.40
codegen_flags: <defaults>
</compile_context>

<pallas_src>
import functools

import jax
import jax.numpy as jnp
from jax.experimental import pallas as pl
from jax.experimental.pallas import tpu as pltpu

NIN, NOUT, KS, ST, PAD = 8, 11, 3, 2, 1
K = NIN * KS * KS            # 72 -- kept unpadded (full dim, divisible by 8)
LANE = 128
BN_EPS = 1e-5
VMEM_LIMIT = 32 * 1024 * 1024


def _round_up(a, b):
    return (a + b - 1) // b * b


def _conv_stats_kernel(w_ref, p_ref, gb_ref, conv_ref, st_ref, *, m_valid):
    """Pass 1: conv tile (bf16 x bf16 -> f32 MXU) + per-channel sum/sumsq accumulation.

    st_ref is a resident (Cout, 2) f32 accumulator across the 'arbitrary' M-tile axis;
    on the last step it is finalized in place to the folded BN scale/shift [s, t].
    """
    i = pl.program_id(0)

    conv = jnp.dot(w_ref[...], p_ref[...], preferred_element_type=jnp.float32)  # (Cout, TM)
    conv_ref[...] = conv
    # (conv bias intentionally omitted: exactly cancelled by the BN mean subtraction)

    @pl.when(i == 0)
    def _init():
        st_ref[...] = jnp.zeros_like(st_ref)

    # f32 sum / sum-of-squares; zero-padded M columns contribute exactly 0.
    st_ref[...] += jnp.concatenate(
        [jnp.sum(conv, axis=1, keepdims=True),
         jnp.sum(conv * conv, axis=1, keepdims=True)], axis=1)

    @pl.when(i == pl.num_programs(0) - 1)
    def _finalize():
        inv_m = 1.0 / m_valid                      # real M only (padding excluded)
        sums = st_ref[...]
        mean = sums[:, 0:1] * inv_m
        var = sums[:, 1:2] * inv_m - mean * mean   # biased var (PyTorch train-mode BN)
        gb = gb_ref[...]                           # [:, 0] = gamma, [:, 1] = beta
        s = gb[:, 0:1] * jax.lax.rsqrt(var + BN_EPS)
        t = gb[:, 1:2] - mean * s
        st_ref[...] = jnp.concatenate([s, t], axis=1)


def _bn_relu_kernel(conv_ref, st_ref, o_ref):
    """Pass 2 ('parallel' M tiles): y = relu(conv * s + t), lane-dense (Cout, TM) store."""
    st = st_ref[...]
    o_ref[...] = jnp.maximum(conv_ref[...] * st[:, 0:1] + st[:, 1:2], 0.0)


def _im2col_t(x):
    """x: (N, C, H, W) -> patches_T (K, M); K order = (c, kh, kw), M order = (n, ho, wo)."""
    n, c, h, w = x.shape
    ho = (h + 2 * PAD - KS) // ST + 1
    wo = (w + 2 * PAD - KS) // ST + 1
    xp = jnp.pad(x, ((0, 0), (0, 0), (PAD, PAD), (PAD, PAD)))
    cols = []
    for ki in range(KS):
        for kj in range(KS):
            cols.append(xp[:, :, ki:ki + ST * ho:ST, kj:kj + ST * wo:ST])  # (N,C,Ho,Wo)
    p = jnp.stack(cols, axis=0)               # (ks*ks, N, C, Ho, Wo)
    p = jnp.transpose(p, (2, 0, 1, 3, 4))     # (C, ks*ks, N, Ho, Wo)
    return p.reshape(c * KS * KS, n * ho * wo), ho, wo


def conv2d_bn_relu(x, w, b, gamma, beta, *, tile_m=512):
    """x: (N,Cin,H,W); w: (Cout,Cin,ks,ks); b/gamma/beta: (Cout,).
    `b` is accepted for API parity but unused: train-mode BN cancels it exactly."""
    del b
    n = x.shape[0]

    # bf16 matmul operands (f32 accumulation in-kernel); im2col done wrapper-side in bf16.
    x_bf = x.astype(jnp.bfloat16)
    p_t, ho, wo = _im2col_t(x_bf)                              # (K, M) bf16
    m = p_t.shape[1]

    # Lane-dense tiling: TILE_M multiple of 128; pad M with zero columns if ragged.
    tm = min(_round_up(tile_m, LANE), _round_up(m, LANE))
    m_pad = _round_up(m, tm)
    if m_pad != m:
        p_t = jnp.pad(p_t, ((0, 0), (0, m_pad - m)))
    nt = m_pad // tm

    w_bf = w.reshape(NOUT, K).astype(jnp.bfloat16)             # (Cout, K) bf16
    gb = jnp.stack([gamma, beta], axis=1).astype(jnp.float32)  # (Cout, 2) f32

    # Pass 1: conv tiles + BN stats (resident accumulator over the 'arbitrary' axis).
    conv_t, st = pl.pallas_call(
        functools.partial(_conv_stats_kernel, m_valid=float(m)),
        out_shape=(jax.ShapeDtypeStruct((NOUT, m_pad), jnp.float32),
                   jax.ShapeDtypeStruct((NOUT, 2), jnp.float32)),
        grid=(nt,),
        in_specs=[
            pl.BlockSpec((NOUT, K), lambda i: (0, 0)),
            pl.BlockSpec((K, tm), lambda i: (0, i)),
            pl.BlockSpec((NOUT, 2), lambda i: (0, 0)),
        ],
        out_specs=[
            pl.BlockSpec((NOUT, tm), lambda i: (0, i)),
            pl.BlockSpec((NOUT, 2), lambda i: (0, 0)),
        ],
        compiler_params=pltpu.CompilerParams(
            dimension_semantics=("arbitrary",), vmem_limit_bytes=VMEM_LIMIT),
    )(w_bf, p_t, gb)

    # Pass 2: apply folded BN + ReLU; 'parallel' -> megacore sharding on v7x.
    out_t = pl.pallas_call(
        _bn_relu_kernel,
        out_shape=jax.ShapeDtypeStruct((NOUT, m_pad), jnp.float32),
        grid=(nt,),
        in_specs=[
            pl.BlockSpec((NOUT, tm), lambda i: (0, i)),
            pl.BlockSpec((NOUT, 2), lambda i: (0, 0)),
        ],
        out_specs=pl.BlockSpec((NOUT, tm), lambda i: (0, i)),
        compiler_params=pltpu.CompilerParams(
            dimension_semantics=("parallel",), vmem_limit_bytes=VMEM_LIMIT),
    )(conv_t, st)

    out_t = out_t[:, :m]
    # (Cout, N*Ho*Wo) -> (N, Cout, Ho, Wo).  Tiny at these sizes; TODO(synk): for
    # production, return the lane-dense (Cout, M) layout directly if the consumer allows.
    return jnp.transpose(out_t.reshape(NOUT, n, ho, wo), (1, 0, 2, 3))


def _reference(x, w, b, gamma, beta):
    # Same bf16 operand rounding as the kernel's MXU path (f32 accumulation); bias kept
    # (cancelled exactly by the train-mode BN mean subtraction) -- matches PyTorch
    # Conv2d -> BatchNorm2d(train) -> ReLU up to that rounding.
    xr = x.astype(jnp.bfloat16).astype(jnp.float32)
    wr = w.astype(jnp.bfloat16).astype(jnp.float32)
    conv = jax.lax.conv_general_dilated(
        xr, wr, window_strides=(ST, ST), padding=((PAD, PAD), (PAD, PAD)),
        dimension_numbers=("NCHW", "OIHW", "NCHW"))
    conv = conv + b[None, :, None, None]
    mean = jnp.mean(conv, axis=(0, 2, 3), keepdims=True)
    var = jnp.mean((conv - mean) ** 2, axis=(0, 2, 3), keepdims=True)
    y = (conv - mean) * jax.lax.rsqrt(var + BN_EPS)
    y = y * gamma[None, :, None, None] + beta[None, :, None, None]
    return jnp.maximum(y, 0.0)


if __name__ == "__main__":
    key = jax.random.PRNGKey(0)
    kx, kw, kb, kg, kbe = jax.random.split(key, 5)

    x = jax.random.normal(kx, (2, NIN, 16, 16), dtype=jnp.float32)
    fan_in = NIN * KS * KS
    bound = 1.0 / (fan_in ** 0.5)
    w = jax.random.uniform(kw, (NOUT, NIN, KS, KS), jnp.float32, -bound, bound)
    b = jax.random.uniform(kb, (NOUT,), jnp.float32, -bound, bound)
    gamma = jax.random.uniform(kg, (NOUT,), jnp.float32, 0.5, 1.5)
    beta = jax.random.uniform(kbe, (NOUT,), jnp.float32, -0.5, 0.5)

    fused = jax.jit(conv2d_bn_relu)
    out = fused(x, w, b, gamma, beta)
    jax.block_until_ready(out)

    ref = _reference(x, w, b, gamma, beta)
    assert out.shape == (2, NOUT, 8, 8), out.shape
    max_err = float(jnp.max(jnp.abs(out - ref)))
    assert jnp.allclose(out, ref, atol=1e-3, rtol=1e-3), max_err

    print("KERNEL_OK")
</pallas_src>

<mosaic_0001>
module attributes {stable_mosaic.version = 11 : i64} {
  func.func @_bn_relu_kernel(%arg0: i32, %arg1: memref<11x128xf32, #tpu.memory_space<vmem>>, %arg2: memref<11x2xf32, #tpu.memory_space<vmem>>, %arg3: memref<11x128xf32, #tpu.memory_space<vmem>>) attributes {dimension_semantics = [#tpu.dimension_semantics<parallel>], iteration_bounds = array<i64: 1>, scalar_prefetch = 0 : i64, scratch_operands = 0 : i64, tpu.core_type = #tpu.core_type<tc>, window_params = [{transform_indices = @transform_0, window_bounds = array<i64: 11, 128>}, {pipeline_mode = #tpu.pipeline_mode<synchronous>, transform_indices = @transform_1, window_bounds = array<i64: 11, 2>}, {transform_indices = @transform_2, window_bounds = array<i64: 11, 128>}]} {
    %c0 = arith.constant 0 : index
    %c0_0 = arith.constant 0 : index
    %0 = vector.load %arg2[%c0, %c0_0] : memref<11x2xf32, #tpu.memory_space<vmem>>, vector<11x2xf32>
    %c0_1 = arith.constant 0 : index
    %c0_2 = arith.constant 0 : index
    %1 = vector.load %arg1[%c0_1, %c0_2] : memref<11x128xf32, #tpu.memory_space<vmem>>, vector<11x128xf32>
    %2 = vector.extract_strided_slice %0 {offsets = [0, 0], sizes = [11, 1], strides = [1, 1]} : vector<11x2xf32> to vector<11x1xf32>
    %3 = vector.broadcast %2 : vector<11x1xf32> to vector<11x128xf32>
    %4 = arith.mulf %1, %3 : vector<11x128xf32>
    %5 = vector.extract_strided_slice %0 {offsets = [0, 1], sizes = [11, 1], strides = [1, 1]} : vector<11x2xf32> to vector<11x1xf32>
    %6 = vector.broadcast %5 : vector<11x1xf32> to vector<11x128xf32>
    %7 = arith.addf %4, %6 : vector<11x128xf32>
    %cst = arith.constant 0.000000e+00 : f32
    %8 = vector.broadcast %cst : f32 to vector<11x128xf32>
    %9 = arith.maximumf %7, %8 : vector<11x128xf32>
    %c0_3 = arith.constant 0 : index
    %c0_4 = arith.constant 0 : index
    %10 = vector.load %arg3[%c0_3, %c0_4] : memref<11x128xf32, #tpu.memory_space<vmem>>, vector<11x128xf32>
    tpu.vector_store %arg3[%c0_3, %c0_4], %9 {strides = array<i32>} : memref<11x128xf32, #tpu.memory_space<vmem>>, vector<11x128xf32>,
    return
  }
  func.func @transform_0(%arg0: i32) -> (i32, i32) {
    %c0_i32 = arith.constant 0 : i32
    %c0_i32_0 = arith.constant 0 : i32
    return %c0_i32, %arg0 : i32, i32
  }
  func.func @transform_1(%arg0: i32) -> (i32, i32) {
    %c0_i32 = arith.constant 0 : i32
    %c0_i32_0 = arith.constant 0 : i32
    %c0_i32_1 = arith.constant 0 : i32
    return %c0_i32, %c0_i32_0 : i32, i32
  }
  func.func @transform_2(%arg0: i32) -> (i32, i32) {
    %c0_i32 = arith.constant 0 : i32
    %c0_i32_0 = arith.constant 0 : i32
    return %c0_i32, %arg0 : i32, i32
  }
}

module attributes {stable_mosaic.version = 11 : i64} {
  func.func @_conv_stats_kernel(%arg0: i32, %arg1: memref<11x72xbf16, #tpu.memory_space<vmem>>, %arg2: memref<72x128xbf16, #tpu.memory_space<vmem>>, %arg3: memref<11x2xf32, #tpu.memory_space<vmem>>, %arg4: memref<11x128xf32, #tpu.memory_space<vmem>>, %arg5: memref<11x2xf32, #tpu.memory_space<vmem>>) attributes {dimension_semantics = [#tpu.dimension_semantics<arbitrary>], iteration_bounds = array<i64: 1>, scalar_prefetch = 0 : i64, scratch_operands = 0 : i64, tpu.core_type = #tpu.core_type<tc>, window_params = [{pipeline_mode = #tpu.pipeline_mode<synchronous>, transform_indices = @transform_0, window_bounds = array<i64: 11, 72>}, {transform_indices = @transform_1, window_bounds = array<i64: 72, 128>}, {pipeline_mode = #tpu.pipeline_mode<synchronous>, transform_indices = @transform_2, window_bounds = array<i64: 11, 2>}, {transform_indices = @transform_3, window_bounds = array<i64: 11, 128>}, {pipeline_mode = #tpu.pipeline_mode<synchronous>, transform_indices = @transform_4, window_bounds = array<i64: 11, 2>}]} {
    %c0 = arith.constant 0 : index
    %c0_0 = arith.constant 0 : index
    %0 = vector.load %arg1[%c0, %c0_0] : memref<11x72xbf16, #tpu.memory_space<vmem>>, vector<11x72xbf16>
    %c0_1 = arith.constant 0 : index
    %c0_2 = arith.constant 0 : index
    %1 = vector.load %arg2[%c0_1, %c0_2] : memref<72x128xbf16, #tpu.memory_space<vmem>>, vector<72x128xbf16>
    %cst = arith.constant dense<0.000000e+00> : vector<11x128xf32>
    %2 = tpu.matmul %0, %1, %cst {dimension_numbers = #tpu.dot_dimension_numbers<[1], [0], [0], [1], [0, 0, 1, 1], [], []>} : vector<11x72xbf16>, vector<72x128xbf16>, vector<11x128xf32> -> vector<11x128xf32>
    %c0_3 = arith.constant 0 : index
    %c0_4 = arith.constant 0 : index
    %3 = vector.load %arg4[%c0_3, %c0_4] : memref<11x128xf32, #tpu.memory_space<vmem>>, vector<11x128xf32>
    tpu.vector_store %arg4[%c0_3, %c0_4], %2 {strides = array<i32>} : memref<11x128xf32, #tpu.memory_space<vmem>>, vector<11x128xf32>,
    %c0_i32 = arith.constant 0 : i32
    %4 = arith.cmpi eq, %arg0, %c0_i32 : i32
    %5 = arith.extui %4 : i1 to i32
    %c0_i32_5 = arith.constant 0 : i32
    %6 = arith.cmpi ne, %5, %c0_i32_5 : i32
    scf.if %6 {
      %cst_14 = arith.constant 0.000000e+00 : f32
      %19 = vector.broadcast %cst_14 : f32 to vector<11x2xf32>
      %c0_15 = arith.constant 0 : index
      %c0_16 = arith.constant 0 : index
      %20 = vector.load %arg5[%c0_15, %c0_16] : memref<11x2xf32, #tpu.memory_space<vmem>>, vector<11x2xf32>
      tpu.vector_store %arg5[%c0_15, %c0_16], %19 {strides = array<i32>} : memref<11x2xf32, #tpu.memory_space<vmem>>, vector<11x2xf32>,
    } else {
    }
    %c0_6 = arith.constant 0 : index
    %c0_7 = arith.constant 0 : index
    %7 = vector.load %arg5[%c0_6, %c0_7] : memref<11x2xf32, #tpu.memory_space<vmem>>, vector<11x2xf32>
    %cst_8 = arith.constant dense<0.000000e+00> : vector<11xf32>
    %8 = vector.multi_reduction <add>, %2, %cst_8 [1] : vector<11x128xf32> to vector<11xf32>
    %9 = vector.shape_cast %8 : vector<11xf32> to vector<11x1xf32>
    %10 = arith.mulf %2, %2 : vector<11x128xf32>
    %cst_9 = arith.constant dense<0.000000e+00> : vector<11xf32>
    %11 = vector.multi_reduction <add>, %10, %cst_9 [1] : vector<11x128xf32> to vector<11xf32>
    %12 = vector.shape_cast %11 : vector<11xf32> to vector<11x1xf32>
    %13 = tpu.concatenate %9, %12 in 1 : vector<11x1xf32>, vector<11x1xf32> -> vector<11x2xf32>
    %14 = arith.addf %7, %13 : vector<11x2xf32>
    %c0_10 = arith.constant 0 : index
    %c0_11 = arith.constant 0 : index
    %15 = vector.load %arg5[%c0_10, %c0_11] : memref<11x2xf32, #tpu.memory_space<vmem>>, vector<11x2xf32>
    tpu.vector_store %arg5[%c0_10, %c0_11], %14 {strides = array<i32>} : memref<11x2xf32, #tpu.memory_space<vmem>>, vector<11x2xf32>,
    %c0_i32_12 = arith.constant 0 : i32
    %16 = arith.cmpi eq, %arg0, %c0_i32_12 : i32
    %17 = arith.extui %16 : i1 to i32
    %c0_i32_13 = arith.constant 0 : i32
    %18 = arith.cmpi ne, %17, %c0_i32_13 : i32
    scf.if %18 {
      %c0_14 = arith.constant 0 : index
      %c0_15 = arith.constant 0 : index
      %19 = vector.load %arg5[%c0_14, %c0_15] : memref<11x2xf32, #tpu.memory_space<vmem>>, vector<11x2xf32>
      %20 = vector.extract_strided_slice %19 {offsets = [0, 0], sizes = [11, 1], strides = [1, 1]} : vector<11x2xf32> to vector<11x1xf32>
      %cst_16 = arith.constant 7.812500e-03 : f32
      %21 = vector.broadcast %cst_16 : f32 to vector<11x1xf32>
      %22 = arith.mulf %20, %21 : vector<11x1xf32>
      %23 = vector.extract_strided_slice %19 {offsets = [0, 1], sizes = [11, 1], strides = [1, 1]} : vector<11x2xf32> to vector<11x1xf32>
      %cst_17 = arith.constant 7.812500e-03 : f32
      %24 = vector.broadcast %cst_17 : f32 to vector<11x1xf32>
      %25 = arith.mulf %23, %24 : vector<11x1xf32>
      %26 = arith.mulf %22, %22 : vector<11x1xf32>
      %27 = arith.subf %25, %26 : vector<11x1xf32>
      %c0_18 = arith.constant 0 : index
      %c0_19 = arith.constant 0 : index
      %28 = vector.load %arg3[%c0_18, %c0_19] : memref<11x2xf32, #tpu.memory_space<vmem>>, vector<11x2xf32>
      %29 = vector.extract_strided_slice %28 {offsets = [0, 0], sizes = [11, 1], strides = [1, 1]} : vector<11x2xf32> to vector<11x1xf32>
      %cst_20 = arith.constant 9.99999974E-6 : f32
      %30 = vector.broadcast %cst_20 : f32 to vector<11x1xf32>
      %31 = arith.addf %27, %30 : vector<11x1xf32>
      %32 = math.rsqrt %31 : vector<11x1xf32>
      %33 = arith.mulf %29, %32 : vector<11x1xf32>
      %34 = vector.extract_strided_slice %28 {offsets = [0, 1], sizes = [11, 1], strides = [1, 1]} : vector<11x2xf32> to vector<11x1xf32>
      %35 = arith.mulf %22, %33 : vector<11x1xf32>
      %36 = arith.subf %34, %35 : vector<11x1xf32>
      %37 = tpu.concatenate %33, %36 in 1 : vector<11x1xf32>, vector<11x1xf32> -> vector<11x2xf32>
      %c0_21 = arith.constant 0 : index
      %c0_22 = arith.constant 0 : index
      %38 = vector.load %arg5[%c0_21, %c0_22] : memref<11x2xf32, #tpu.memory_space<vmem>>, vector<11x2xf32>
      tpu.vector_store %arg5[%c0_21, %c0_22], %37 {strides = array<i32>} : memref<11x2xf32, #tpu.memory_space<vmem>>, vector<11x2xf32>,
    } else {
    }
    return
  }
  func.func @transform_0(%arg0: i32) -> (i32, i32) {
    %c0_i32 = arith.constant 0 : i32
    %c0_i32_0 = arith.constant 0 : i32
    %c0_i32_1 = arith.constant 0 : i32
    return %c0_i32, %c0_i32_0 : i32, i32
  }
  func.func @transform_1(%arg0: i32) -> (i32, i32) {
    %c0_i32 = arith.constant 0 : i32
    %c0_i32_0 = arith.constant 0 : i32
    return %c0_i32, %arg0 : i32, i32
  }
  func.func @transform_2(%arg0: i32) -> (i32, i32) {
    %c0_i32 = arith.constant 0 : i32
    %c0_i32_0 = arith.constant 0 : i32
    %c0_i32_1 = arith.constant 0 : i32
    return %c0_i32, %c0_i32_0 : i32, i32
  }
  func.func @transform_3(%arg0: i32) -> (i32, i32) {
    %c0_i32 = arith.constant 0 : i32
    %c0_i32_0 = arith.constant 0 : i32
    return %c0_i32, %arg0 : i32, i32
  }
  func.func @transform_4(%arg0: i32) -> (i32, i32) {
    %c0_i32 = arith.constant 0 : i32
    %c0_i32_0 = arith.constant 0 : i32
    %c0_i32_1 = arith.constant 0 : i32
    return %c0_i32, %c0_i32_0 : i32, i32
  }
}

</mosaic_0001>

<llo_original>
// kernel: conv2d_bn_relu.3
$region0: #{conv2d_bn_relu.3}
  #allocation0 [shape = 'u32[]', space=smem, size = 0x4, offset = 0x4, fixed_abs, tag = 'smem constant byte address 0x4 - core index']
  #allocation1 [shape = 'u32[144,128]{1,0:T(1,128)}', space=vmem, size = 0x12000, scoped, tag = 'internal scratch']
  %s0 = inlined_call_operand.vmem [shape: f32[11,128], index: 0, kind: input, shape index: {}]
  %s1 = inlined_call_operand.vmem [shape: f32[11,2], index: 1, kind: input, shape index: {}]
  %s2 = inlined_call_operand.vmem [shape: f32[11,128], index: 2, kind: output, shape index: {}]
  %s3 = sld [smem:[#allocation0]]
  $region18: #{conv2d_bn_relu.3} parent=0
    _
  %s5 = ssub.s32 1, %s3
  %s6 = scalar_select 0, %s5, %s3
  // Predicated region
  $region2: #{conv2d_bn_relu.3} parent=0 // pred_check
    _
  $region3: #{conv2d_bn_relu.3} parent=0 // pred_check_branch
    %8 = sbr.rel (0) target = $region5
  $region4: #{conv2d_bn_relu.3} parent=0 // pred_region
    _
  $region5: #{conv2d_bn_relu.3} parent=0 // pred_fallthru
    _
  // Predicated region
  $region6: #{conv2d_bn_relu.3} parent=0 // pred_check
    _
  $region7: #{conv2d_bn_relu.3} parent=0 // pred_check_branch
    %10 = sbr.rel (0) target = $region9
  $region8: #{conv2d_bn_relu.3} parent=0 // pred_region
    _
  $region9: #{conv2d_bn_relu.3} parent=0 // pred_fallthru
    _
  %v11 = vld [vmem:[%s1] sm:$0xff]
  %v12 = vld [vmem:[%s1 + $0x8] sm:$0x7]
  %v13 = vld [vmem:[%s0] sm:$0xff]
  %v14 = vld [vmem:[%s0 + $0x8] sm:$0x7]
  %16 = vset.pattern.permute.xlu0 0
  %17 = vperm.xlu0 %16, %v11
  %v18 = vpop.permute.xlu0 %17
  %21 = vset.pattern.permute.xlu0 0
  %22 = vperm.xlu0 %21, %v12
  %v23 = vpop.permute.xlu0 %22
  %v25 = vmul.f32 %v13, %v18
  %v26 = vmul.f32 %v14, %v23
  %27 = vset.pattern.permute.xlu0 1
  %28 = vperm.xlu0 %27, %v11
  %v29 = vpop.permute.xlu0 %28
  %31 = vset.pattern.permute.xlu0 1
  %32 = vperm.xlu0 %31, %v12
  %v33 = vpop.permute.xlu0 %32
  %v35 = vadd.f32 %v25, %v29
  %v36 = vadd.f32 %v26, %v33
  %v37 = vmax.f32 %v35, 0.0
  %v38 = vmax.f32 %v36, 0.0
  %39 = vst [vmem:[%s2] sm:$0xff] %v37
  %40 = vst [vmem:[%s2 + $0x8] sm:$0x7] %v38
  // Predicated region
  $region10: #{conv2d_bn_relu.3} parent=0 // pred_check
    _
  $region11: #{conv2d_bn_relu.3} parent=0 // pred_check_branch
    %42 = sbr.rel (0) target = $region13
  $region12: #{conv2d_bn_relu.3} parent=0 // pred_region
    _
  $region13: #{conv2d_bn_relu.3} parent=0 // pred_fallthru
    _
  // Predicated region
  $region14: #{conv2d_bn_relu.3} parent=0 // pred_check
    _
  $region15: #{conv2d_bn_relu.3} parent=0 // pred_check_branch
    %44 = sbr.rel (0) target = $region17
  $region16: #{conv2d_bn_relu.3} parent=0 // pred_region
    _
  $region17: #{conv2d_bn_relu.3} parent=0 // pred_fallthru
    _

// kernel: conv2d_bn_relu.2
$region0: #{conv2d_bn_relu.2}
  #allocation0 [shape = 'u32[]', space=smem, size = 0x4, offset = 0x4, fixed_abs, tag = 'smem constant byte address 0x4 - core index']
  #allocation1 [shape = 'u32[144,128]{1,0:T(1,128)}', space=vmem, size = 0x12000, scoped, tag = 'internal scratch']
  %s0 = inlined_call_operand.vmem [shape: bf16[11,72], index: 0, kind: input, shape index: {}]
  %s1 = inlined_call_operand.vmem [shape: bf16[72,128], index: 1, kind: input, shape index: {}]
  %s2 = inlined_call_operand.vmem [shape: f32[11,2], index: 2, kind: input, shape index: {}]
  %s3 = inlined_call_operand.vmem [shape: f32[11,128], index: 3, kind: output, shape index: {0}]
  %s4 = inlined_call_operand.vmem [shape: f32[11,2], index: 4, kind: output, shape index: {1}]
  %5 = xla_tuple %s3, %s4
  %s6 = sld [smem:[#allocation0]]
  $region38: #{conv2d_bn_relu.2} parent=0
    _
  %s8 = ssub.s32 1, %s6
  %s9 = scalar_select 0, %s8, %s6
  // Predicated region
  $region2: #{conv2d_bn_relu.2} parent=0 // pred_check
    _
  $region3: #{conv2d_bn_relu.2} parent=0 // pred_check_branch
    %11 = sbr.rel (0) target = $region5
  $region4: #{conv2d_bn_relu.2} parent=0 // pred_region
    _
  $region5: #{conv2d_bn_relu.2} parent=0 // pred_fallthru
    _
  // Predicated region
  $region6: #{conv2d_bn_relu.2} parent=0 // pred_check
    _
  $region7: #{conv2d_bn_relu.2} parent=0 // pred_check_branch
    %13 = sbr.rel (0) target = $region9
  $region8: #{conv2d_bn_relu.2} parent=0 // pred_region
    _
  $region9: #{conv2d_bn_relu.2} parent=0 // pred_fallthru
    _
  // Predicated region
  $region10: #{conv2d_bn_relu.2} parent=0 // pred_check
    _
  $region11: #{conv2d_bn_relu.2} parent=0 // pred_check_branch
    %15 = sbr.rel (0) target = $region13
  $region12: #{conv2d_bn_relu.2} parent=0 // pred_region
    _
  $region13: #{conv2d_bn_relu.2} parent=0 // pred_fallthru
    _
  %v17 = vld [vmem:[%s0] sm:$0xf]
  %v18 = vld [vmem:[%s0 + $0x4] sm:$0x3]
  %v19 = vld [vmem:[%s1] sm:$0xf]
  %v20 = vld [vmem:[%s1 + $0x4] sm:$0xf]
  %v21 = vld [vmem:[%s1 + $0x8] sm:$0xf]
  %v22 = vld [vmem:[%s1 + $0xc] sm:$0xf]
  %v23 = vld [vmem:[%s1 + $0x10] sm:$0xf]
  %v24 = vld [vmem:[%s1 + $0x14] sm:$0xf]
  %v25 = vld [vmem:[%s1 + $0x18] sm:$0xf]
  %v26 = vld [vmem:[%s1 + $0x1c] sm:$0xf]
  %v27 = vld [vmem:[%s1 + $0x20] sm:$0xf]
  %v30 = vunpack.c.l.b16 %v17
  %v31 = vunpack.c.l.b16 %v18
  %v32 = vpack.c.b16 %v31, %v30
  %v42 = vunpack.c.l.b16 %v19
  %v43 = vunpack.c.l.b16 %v20
  %v44 = vunpack.c.l.b16 %v21
  %v45 = vunpack.c.l.b16 %v22
  %v46 = vunpack.c.l.b16 %v23
  %v47 = vunpack.c.l.b16 %v24
  %v48 = vunpack.c.l.b16 %v25
  %v49 = vunpack.c.l.b16 %v26
  %v50 = vunpack.c.l.b16 %v27
  %v51 = vpack.c.b16 %v43, %v42
  %v52 = vpack.c.b16 %v45, %v44
  %v53 = vpack.c.b16 %v47, %v46
  %v54 = vpack.c.b16 %v49, %v48
  %v55 = vpack.c.b16 %v50, %v50
  %vm60 = vcmask 588800
  %v62 = vsel %vm60, %v32, 0
  %vm64 = vcmask 1043456
  %v66 = vsel %vm64, %v55, 0
  %68 = vmatprep.subr.bf16.mxu0 0
  %69 = vmatpush1.bf16.msra.mxu0 0
  %70 = vmatprep.subr.bf16.mxu0 0
  %71 = vmatpush1.bf16.msra.mxu0 0
  %72 = vmatprep.subr.bf16.mxu0 0
  %73 = vmatpush1.bf16.msra.mxu0 0
  %74 = vmatprep.subr.bf16.mxu0 0
  %75 = vmatpush1.bf16.msra.mxu0 %v66
  %76 = vmatprep.subr.bf16.mxu0 0
  %77 = vmatpush1.bf16.msra.mxu0 %v54
  %78 = vmatprep.subr.bf16.mxu0 0
  %79 = vmatpush1.bf16.msra.mxu0 %v53
  %80 = vmatprep.subr.bf16.mxu0 0
  %81 = vmatpush1.bf16.msra.mxu0 %v52
  %82 = vmatprep.subr.bf16.mxu0 0
  %83 = vmatpush1.bf16.msra.mxu0 %v51
  %84 = vmatprep.subr.bf16.mxu0 0
  %85 = vmatpush2.bf16.msra.mxu0 0
  %86 = vmatprep.subr.bf16.mxu0 0
  %87 = vmatpush2.bf16.msra.mxu0 0
  %88 = vmatprep.subr.bf16.mxu0 0
  %89 = vmatpush2.bf16.msra.mxu0 0
  %90 = vmatprep.subr.bf16.mxu0 0
  %91 = vmatpush2.bf16.msra.mxu0 0
  %92 = vmatprep.subr.bf16.mxu0 0
  %93 = vmatpush2.bf16.msra.mxu0 0
  %94 = vmatprep.subr.bf16.mxu0 0
  %95 = vmatpush2.bf16.msra.mxu0 0
  %96 = vmatprep.subr.bf16.mxu0 0
  %97 = vmatpush2.bf16.msra.mxu0 0
  %98 = vmatprep.subr.bf16.mxu0 0
  %99 = vmatpush2.bf16.msra.mxu0 0
  %100 = vmatprep.mubr.bf16.mxu0 0
  %101 = vmatmul.mubr.bf16.gmra.mxu0 %v62
  %v102 = vpop.f32.mrf.mxu0
  %v103 = vadd.f32 0.0, %v102
  %v104 = vpop.f32.mrf.mxu0
  %v105 = vpop.f32.mrf.mxu0
  %v106 = vadd.f32 0.0, %v105
  %v107 = vpop.f32.mrf.mxu0
  %108 = vdwg.mxu0
  %109 = vst [vmem:[%s3] sm:$0xff] %v103
  %110 = vst [vmem:[%s3 + $0x8] sm:$0x7] %v106
  %p111 = scmp.eq.s32.totalorder 0, 0
  // Predicated region
  $region14: #{conv2d_bn_relu.2} parent=0 // pred_check
    %p112 = pneg %p111
  $region15: #{conv2d_bn_relu.2} parent=0 // pred_check_branch
    %114 = sbr.rel (%p112) target = $region17
  $region16: #{conv2d_bn_relu.2} parent=0 // pred_region
    %vm115 = vcmask 15360
    %116 = vst.msk [vmem:[%s4] sm:$0xff] %vm115, 0.0
    %vm117 = vcmask 10240
    %118 = vst.msk [vmem:[%s4 + $0x8] sm:$0x7] %vm117, 0.0
  $region17: #{conv2d_bn_relu.2} parent=0 // pred_fallthru
    _
  %v119 = vld [vmem:[%s4] sm:$0xff]
  %v120 = vld [vmem:[%s4 + $0x8] sm:$0x7]
  %121 = vadd.xlane.f32.xlu0 %v103
  %v122 = vpop.xlane.xlu0 %121
  %vm123 = vcmask 1042432
  %v124 = vsel %vm123, %v106, 0.0
  %125 = vadd.xlane.f32.xlu0 %v124
  %v126 = vpop.xlane.xlu0 %125
  %v127 = vmul.f32 %v103, %v103
  %v128 = vmul.f32 %v106, %v106
  %129 = vadd.xlane.f32.xlu0 %v127
  %v130 = vpop.xlane.xlu0 %129
  %v131 = vsel %vm123, %v128, 0.0
  %132 = vadd.xlane.f32.xlu0 %v131
  %v133 = vpop.xlane.xlu0 %132
  %vm134 = vcmask 7168
  %v135 = vsel %vm134, %v122, %v130
  %v136 = vsel %vm134, %v126, %v133
  %v137 = vadd.f32 %v119, %v135
  %v138 = vadd.f32 %v120, %v136
  %vm139 = vcmask 15360
  %140 = vst.msk [vmem:[%s4] sm:$0xff] %vm139, %v137
  %vm141 = vcmask 10240
  %142 = vst.msk [vmem:[%s4 + $0x8] sm:$0x7] %vm141, %v138
  // Predicated region
  $region18: #{conv2d_bn_relu.2} parent=0 // pred_check
    %p143 = pneg %p111
  $region19: #{conv2d_bn_relu.2} parent=0 // pred_check_branch
    %145 = sbr.rel (%p143) target = $region21
  $region20: #{conv2d_bn_relu.2} parent=0 // pred_region
    %v146 = vld [vmem:[%s4] sm:$0xff]
    %v147 = vld [vmem:[%s4 + $0x8] sm:$0x7]
    %v148 = vmul.f32 %v146, 0.0078125
    %v149 = vmul.f32 %v147, 0.0078125
    %v150 = vmul.f32 %v148, %v148
    %v151 = vmul.f32 %v149, %v149
    %154 = vrot.lane.b32.xlu0 %v150, 1
    %v155 = vpop.permute.xlu0 %154
    %156 = vrot.lane.b32.xlu0 %v151, 1
    %v157 = vpop.permute.xlu0 %156
    %v160 = vsub.f32 %v148, %v155
    %v161 = vsub.f32 %v149, %v157
    %v162 = vld [vmem:[%s2] sm:$0xff]
    %v163 = vld [vmem:[%s2 + $0x8] sm:$0x7]
    %v164 = vadd.f32 %v160, 1e-05
    %v165 = vadd.f32 %v161, 1e-05
    %v166 = vrsqrt.pop %v164
    %v167 = vrsqrt.pop %v165
    %170 = vrot.lane.b32.xlu0 %v166, 127
    %v171 = vpop.permute.xlu0 %170
    %172 = vrot.lane.b32.xlu0 %v167, 127
    %v173 = vpop.permute.xlu0 %172
    %v176 = vmul.f32 %v162, %v171
    %v177 = vmul.f32 %v163, %v173
    %v178 = vmul.f32 %v148, %v176
    %v179 = vmul.f32 %v149, %v177
    %182 = vrot.lane.b32.xlu0 %v178, 1
    %v183 = vpop.permute.xlu0 %182
    %184 = vrot.lane.b32.xlu0 %v179, 1
    %v185 = vpop.permute.xlu0 %184
    %v188 = vsub.f32 %v162, %v183
    %v189 = vsub.f32 %v163, %v185
    %v190 = vsel %vm134, %v176, %v188
    %v191 = vsel %vm134, %v177, %v189
    %192 = vst.msk [vmem:[%s4] sm:$0xff] %vm139, %v190
    %193 = vst.msk [vmem:[%s4 + $0x8] sm:$0x7] %vm141, %v191
  $region21: #{conv2d_bn_relu.2} parent=0 // pred_fallthru
    _
  // Predicated region
  $region22: #{conv2d_bn_relu.2} parent=0 // pred_check
    _
  $region23: #{conv2d_bn_relu.2} parent=0 // pred_check_branch
    %195 = sbr.rel (0) target = $region25
  $region24: #{conv2d_bn_relu.2} parent=0 // pred_region
    _
  $region25: #{conv2d_bn_relu.2} parent=0 // pred_fallthru
    _
  // Predicated region
  $region26: #{conv2d_bn_relu.2} parent=0 // pred_check
    _
  $region27: #{conv2d_bn_relu.2} parent=0 // pred_check_branch
    %197 = sbr.rel (0) target = $region29
  $region28: #{conv2d_bn_relu.2} parent=0 // pred_region
    _
  $region29: #{conv2d_bn_relu.2} parent=0 // pred_fallthru
    _
  // Predicated region
  $region30: #{conv2d_bn_relu.2} parent=0 // pred_check
    _
  $region31: #{conv2d_bn_relu.2} parent=0 // pred_check_branch
    %199 = sbr.rel (0) target = $region33
  $region32: #{conv2d_bn_relu.2} parent=0 // pred_region
    _
  $region33: #{conv2d_bn_relu.2} parent=0 // pred_fallthru
    _
  // Predicated region
  $region34: #{conv2d_bn_relu.2} parent=0 // pred_check
    _
  $region35: #{conv2d_bn_relu.2} parent=0 // pred_check_branch
    %201 = sbr.rel (0) target = $region37
  $region36: #{conv2d_bn_relu.2} parent=0 // pred_region
    _
  $region37: #{conv2d_bn_relu.2} parent=0 // pred_fallthru
    _

</llo_original>
